<compile_context>
chip_gen: v5e
topology: v5e:2x2
jax: 0.10.0
libtpu: 0.0.40
codegen_flags: <defaults>
</compile_context>

<pallas_src>
import jax
import jax.numpy as jnp
from jax.experimental import pallas as pl
from jax.experimental.pallas import tpu as pltpu


# ---- module "parameters" (from __init__ semantics) --------------------------
BIT = 8
BIAS_INPUT = 1
SYMMETRIC = True
ALL_POSITIVE = False
if ALL_POSITIVE:
    THD_NEG = 0.0
    THD_POS = float(2 ** BIT - 1)
elif SYMMETRIC:
    THD_NEG = float(-2 ** (BIT - 1) + 1)   # -127
    THD_POS = float(2 ** (BIT - 1) - 1)    # +127

_LANE_CANDIDATES = (4096, 2048, 1024, 512, 256, 128)
_TARGET_TILE_BYTES = 2 * 1024 * 1024       # ~2 MiB per buffer -> ~8 MiB VMEM total


def _bias_quant_kernel(sc_ref, x_ref, o_ref):
    # sc_ref: (2,) f32 in SMEM: [s, 1/s].  x_ref/o_ref: (tile_rows, lanes) in
    # the input's original dtype; compute in f32, store back in orig dtype.
    s = sc_ref[0]
    inv_s = sc_ref[1]
    xf = x_ref[...].astype(jnp.float32)
    q = jnp.round(jnp.clip(xf * inv_s, THD_NEG, THD_POS))
    o_ref[...] = (q * s).astype(o_ref.dtype)


def bias_quantizer_forward(x, scale):
    """x: arbitrary-shape float tensor (e.g. NCHW), scale: scalar."""
    orig_shape = x.shape
    orig_dtype = x.dtype
    n = x.size
    itemsize = jnp.dtype(orig_dtype).itemsize

    flat = x.reshape(-1)

    # ---- lane-dense 2-D slab layout (rows, lanes); avoid padding if we can --
    lanes = None
    for w in _LANE_CANDIDATES:
        if n % w == 0:
            lanes = w
            break
    padded_n = n
    if lanes is None:                          # ragged tail: pad once
        lanes = 1024
        pad = (-n) % lanes
        flat = jnp.concatenate([flat, jnp.zeros((pad,), orig_dtype)])
        padded_n = n + pad
    rows = padded_n // lanes

    # ---- tile rows: ~2 MiB per buffer, multiple of 8, dividing rows ---------
    tr_target = max(8, (_TARGET_TILE_BYTES // (lanes * itemsize)) // 8 * 8)
    if rows <= tr_target:
        tile_rows = rows                       # one block == full array
    else:
        tile_rows = 0
        t = tr_target
        while t >= 8:
            if rows % t == 0:
                tile_rows = t
                break
            t -= 8
        if tile_rows == 0:                     # no friendly divisor: pad rows
            extra = (-rows) % tr_target
            flat = jnp.concatenate(
                [flat, jnp.zeros((extra * lanes,), orig_dtype)])
            rows += extra
            padded_n = rows * lanes
            tile_rows = tr_target

    x2d = flat.reshape(rows, lanes)

    # ---- hoisted scalar prep: s and exact 1/s, shipped via SMEM -------------
    s = jnp.asarray(scale, jnp.float32) * jnp.float32(BIAS_INPUT)
    inv_s = jnp.float32(1.0) / s
    scale_arr = jnp.stack([s, inv_s]).astype(jnp.float32)   # (2,)

    grid = (rows // tile_rows,)
    out2d = pl.pallas_call(
        _bias_quant_kernel,
        out_shape=jax.ShapeDtypeStruct((rows, lanes), orig_dtype),
        grid_spec=pltpu.PrefetchScalarGridSpec(
            num_scalar_prefetch=0,
            grid=grid,
            in_specs=[
                pl.BlockSpec(memory_space=pltpu.SMEM),               # [s, 1/s]
                pl.BlockSpec((tile_rows, lanes), lambda i: (i, 0)),  # x tile
            ],
            out_specs=pl.BlockSpec((tile_rows, lanes), lambda i: (i, 0)),
        ),
        compiler_params=pltpu.CompilerParams(
            dimension_semantics=("parallel",),        # shard across v7x's 2 TCs
            vmem_limit_bytes=32 * 1024 * 1024,        # headroom over v5e default
        ),
    )(scale_arr, x2d)

    if padded_n != n:
        return out2d.reshape(-1)[:n].reshape(orig_shape)
    return out2d.reshape(orig_shape)


def _reference(x, scale):
    # Same reciprocal-multiply formulation the kernel uses (matches torch's
    # x/scale to <=1 ulp before rounding); all other ops are identical.
    s = jnp.asarray(scale, jnp.float32) * jnp.float32(BIAS_INPUT)
    inv_s = jnp.float32(1.0) / s
    q = jnp.round(jnp.clip(x.astype(jnp.float32) * inv_s, THD_NEG, THD_POS))
    return (q * s).astype(x.dtype)


if __name__ == "__main__":
    key = jax.random.PRNGKey(0)
    kx, ks, kx2 = jax.random.split(key, 3)

    # small NCHW-shaped tensor, consistent with quantizing a conv bias/weight blob
    x = jax.random.normal(kx, (2, 4, 16, 16), dtype=jnp.float32) * 0.5
    scale = jnp.float32(0.01) + jnp.abs(jax.random.normal(ks, ())) * 0.001

    out = jax.block_until_ready(bias_quantizer_forward(x, scale))
    ref = _reference(x, scale)
    assert out.shape == x.shape and out.dtype == x.dtype
    assert jnp.allclose(out, ref, atol=1e-6, rtol=1e-6), "mismatch vs reference"

    # ragged + bf16 case: exercises the padding fallback and in-kernel casts
    x2 = (jax.random.normal(kx2, (3, 5, 7), dtype=jnp.float32) * 0.5).astype(jnp.bfloat16)
    out2 = jax.block_until_ready(bias_quantizer_forward(x2, scale))
    ref2 = _reference(x2, scale)
    assert out2.shape == x2.shape and out2.dtype == x2.dtype
    assert jnp.allclose(out2.astype(jnp.float32), ref2.astype(jnp.float32),
                        atol=1e-6, rtol=1e-6), "mismatch vs reference (bf16)"

    print("KERNEL_OK")
</pallas_src>

<mosaic_0001>
module attributes {stable_mosaic.version = 11 : i64} {
  func.func @_bias_quant_kernel(%arg0: i32, %arg1: memref<2xf32, #tpu.memory_space<smem>>, %arg2: memref<1x2048xf32, #tpu.memory_space<vmem>>, %arg3: memref<1x2048xf32, #tpu.memory_space<vmem>>) attributes {dimension_semantics = [#tpu.dimension_semantics<parallel>], iteration_bounds = array<i64: 1>, scalar_prefetch = 0 : i64, scratch_operands = 0 : i64, tpu.core_type = #tpu.core_type<tc>, window_params = [{transform_indices = @transform_0, window_bounds = array<i64: 2>}, {transform_indices = @transform_1, window_bounds = array<i64: 1, 2048>}, {transform_indices = @transform_2, window_bounds = array<i64: 1, 2048>}]} {
    %c0 = arith.constant 0 : index
    %0 = memref.load %arg1[%c0] : memref<2xf32, #tpu.memory_space<smem>>
    %c1 = arith.constant 1 : index
    %1 = memref.load %arg1[%c1] : memref<2xf32, #tpu.memory_space<smem>>
    %c0_0 = arith.constant 0 : index
    %c0_1 = arith.constant 0 : index
    %2 = vector.load %arg2[%c0_0, %c0_1] : memref<1x2048xf32, #tpu.memory_space<vmem>>, vector<1x2048xf32>
    %3 = vector.broadcast %1 : f32 to vector<1x2048xf32>
    %4 = arith.mulf %2, %3 : vector<1x2048xf32>
    %cst = arith.constant -1.270000e+02 : f32
    %cst_2 = arith.constant 1.270000e+02 : f32
    %5 = vector.broadcast %cst : f32 to vector<1x2048xf32>
    %6 = arith.maximumf %5, %4 : vector<1x2048xf32>
    %7 = vector.broadcast %cst_2 : f32 to vector<1x2048xf32>
    %8 = arith.minimumf %7, %6 : vector<1x2048xf32>
    %9 = math.roundeven %8 : vector<1x2048xf32>
    %10 = vector.broadcast %0 : f32 to vector<1x2048xf32>
    %11 = arith.mulf %9, %10 : vector<1x2048xf32>
    %c0_3 = arith.constant 0 : index
    %c0_4 = arith.constant 0 : index
    %12 = vector.load %arg3[%c0_3, %c0_4] : memref<1x2048xf32, #tpu.memory_space<vmem>>, vector<1x2048xf32>
    tpu.vector_store %arg3[%c0_3, %c0_4], %11 {strides = array<i32>} : memref<1x2048xf32, #tpu.memory_space<vmem>>, vector<1x2048xf32>,
    return
  }
  func.func @transform_0(%arg0: i32) -> i32 {
    %c0_i32 = arith.constant 0 : i32
    %c0_i32_0 = arith.constant 0 : i32
    return %c0_i32 : i32
  }
  func.func @transform_1(%arg0: i32) -> (i32, i32) {
    %c0_i32 = arith.constant 0 : i32
    %c0_i32_0 = arith.constant 0 : i32
    return %arg0, %c0_i32 : i32, i32
  }
  func.func @transform_2(%arg0: i32) -> (i32, i32) {
    %c0_i32 = arith.constant 0 : i32
    %c0_i32_0 = arith.constant 0 : i32
    return %arg0, %c0_i32 : i32, i32
  }
}

</mosaic_0001>

<llo_original>
// kernel: tpu_custom_call.1
$region0: #{tpu_custom_call.1}
  #allocation0 [shape = 'u32[]', space=smem, size = 0x4, offset = 0x4, fixed_abs, tag = 'smem constant byte address 0x4 - core index']
  #allocation1 [shape = 'u32[72,128]{1,0:T(1,128)}', space=vmem, size = 0x9000, scoped, tag = 'internal scratch']
  %s0 = inlined_call_operand.hbm [shape: f32[2], index: 0, kind: input, shape index: {}]
  %s1 = inlined_call_operand.hbm [shape: f32[1,2048], index: 1, kind: input, shape index: {}]
  %s2 = inlined_call_operand.hbm [shape: f32[1,2048], index: 2, kind: output, shape index: {}]
  %s3 = sld [smem:[#allocation0]]
  $region26: #{tpu_custom_call.1} parent=0
    _
  %s5 = ssub.s32 1, %s3
  %s6 = scalar_select 0, %s5, %s3
  $region1: #{tpu_custom_call.1} parent=0
    #allocation2 [shape = 'u8[512]{0}', space=smem, size = 0x200, scoped, tag = 'input window, operand 0, single buffered']
    #allocation3 [shape = 's32[1]{0}', space=sflag, size = 0x4, scoped, tag = 'scoped memory for tpu_custom_call.1']
    #allocation4 [shape = 's32[1]{0}', space=sflag, size = 0x4, scoped, tag = 'scoped memory for tpu_custom_call.1']
    #allocation5 [shape = 's32[1]{0}', space=sflag, size = 0x4, scoped, tag = 'scoped memory for tpu_custom_call.1']
    #allocation6 [shape = 'u8[8192]{0}', space=vmem, size = 0x2000, scoped, tag = 'input window, operand 1, single buffered']
    #allocation7 [shape = 'u8[8192]{0}', space=vmem, size = 0x2000, scoped, tag = 'output window, operand 0, single buffered']
    %7 = vsyncpa [#allocation5], 0
    %8 = vsyncpa [#allocation3], 0
    %9 = vsyncpa [#allocation4], 0
    // Predicated region
    $region2: #{tpu_custom_call.1} parent=1 // pred_check
      _
    $region3: #{tpu_custom_call.1} parent=1 // pred_check_branch
      %11 = sbr.rel (0) target = $region5
    $region4: #{tpu_custom_call.1} parent=1 // pred_region
      %13 = vsyncadd [#allocation5], 0
      %s15 = sshll.u32 %s0, 4
      %s16 = int_to_ptr.hbm [resolvable:$true] %s15
      %18 = dma.hbm_to_smem %s16, 16, [#allocation2], [#allocation5]
    $region5: #{tpu_custom_call.1} parent=1 // pred_fallthru
      _
    // Predicated region
    $region6: #{tpu_custom_call.1} parent=1 // pred_check
      _
    $region7: #{tpu_custom_call.1} parent=1 // pred_check_branch
      %20 = sbr.rel (0) target = $region9
    $region8: #{tpu_custom_call.1} parent=1 // pred_region
      %22 = vsyncadd [#allocation3], 0
      %s24 = sshll.u32 %s1, 4
      %s25 = int_to_ptr.hbm [resolvable:$true] %s24
      %s26 = sshll.u32 [#allocation6], 4
      %s27 = int_to_ptr.vmem [resolvable:$true] %s26
      %29 = dma.hbm_to_vmem [thread:$0]  %s25, 256, %s27, [#allocation3]
    $region9: #{tpu_custom_call.1} parent=1 // pred_fallthru
      _
    // Predicated region
    $region10: #{tpu_custom_call.1} parent=1 // pred_check
      _
    $region11: #{tpu_custom_call.1} parent=1 // pred_check_branch
      %31 = sbr.rel (0) target = $region13
    $region12: #{tpu_custom_call.1} parent=1 // pred_region
      %33 = dma.done [#allocation5], 16
    $region13: #{tpu_custom_call.1} parent=1 // pred_fallthru
      _
    // Predicated region
    $region14: #{tpu_custom_call.1} parent=1 // pred_check
      _
    $region15: #{tpu_custom_call.1} parent=1 // pred_check_branch
      %35 = sbr.rel (0) target = $region17
    $region16: #{tpu_custom_call.1} parent=1 // pred_region
      %37 = dma.done [#allocation3], 256
    $region17: #{tpu_custom_call.1} parent=1 // pred_fallthru
      _
    %38 = sfence
    %s39 = sld [smem:[#allocation2]]
    %s40 = sld [smem:[#allocation2 + $0x1]]
    %v41 = vld [vmem:[#allocation6] sm:$0xff]
    %v42 = vld [vmem:[#allocation6 + $0x8] sm:$0xff]
    %v43 = vstv %s40
    %v44 = vmul.f32 %v41, %v43
    %v45 = vmul.f32 %v42, %v43
    %v46 = vmax.f32 %v44, -127.0
    %v47 = vmax.f32 %v45, -127.0
    %v48 = vmin.f32 %v46, 127.0
    %v49 = vmin.f32 %v47, 127.0
    %v50 = vround.ne.pseudo %v48
    %v51 = vround.ne.pseudo %v49
    %v52 = vstv %s39
    %v53 = vmul.f32 %v50, %v52
    %v54 = vmul.f32 %v51, %v52
    %55 = vst [vmem:[#allocation7] sm:$0xff] %v53
    %56 = vst [vmem:[#allocation7 + $0x8] sm:$0xff] %v54
    // Predicated region
    $region18: #{tpu_custom_call.1} parent=1 // pred_check
      _
    $region19: #{tpu_custom_call.1} parent=1 // pred_check_branch
      %58 = sbr.rel (0) target = $region21
    $region20: #{tpu_custom_call.1} parent=1 // pred_region
      %60 = vsyncadd [#allocation4], 0
      %s62 = sshll.u32 [#allocation7], 4
      %s63 = int_to_ptr.vmem [resolvable:$true] %s62
      %s64 = sshll.u32 %s2, 4
      %s65 = int_to_ptr.hbm [resolvable:$true] %s64
      %67 = dma.vmem_to_hbm [thread:$0]  %s63, 256, %s65, [#allocation4]
    $region21: #{tpu_custom_call.1} parent=1 // pred_fallthru
      _
    // Predicated region
    $region22: #{tpu_custom_call.1} parent=1 // pred_check
      _
    $region23: #{tpu_custom_call.1} parent=1 // pred_check_branch
      %69 = sbr.rel (0) target = $region25
    $region24: #{tpu_custom_call.1} parent=1 // pred_region
      %71 = dma.done [#allocation4], 256
    $region25: #{tpu_custom_call.1} parent=1 // pred_fallthru
      _
    %72 = vsyncpa [#allocation3], 1
    %73 = vsyncpa [#allocation4], 1
    %74 = vsyncpa [#allocation5], 1

</llo_original>
